<compile_context>
chip_gen: v7x
topology: tpu7x:2x2x1
jax: 0.10.0
libtpu: 0.0.40
codegen_flags: <defaults>
</compile_context>

<pallas_src>
import math
from functools import partial

import jax
import jax.numpy as jnp
from jax import lax
from jax.experimental import pallas as pl
from jax.experimental.pallas import tpu as pltpu


# --------------------------- tile-size selection ----------------------------

def _tile(dim, pref):
    """`pref` if it evenly divides `dim`, else the full dimension.

    Full-dim blocks are always legal (BlockSpec rule: last-two block dims must
    be multiples of (8, 128) OR equal to the array dims)."""
    if dim <= pref:
        return dim
    if dim % pref == 0:
        return pref
    return dim


# ------------------------------ matmul kernel -------------------------------
# o = relu?(x @ w + b), tiled (M, N, K); bias folded into accumulator init.

def _matmul_kernel(x_ref, w_ref, b_ref, o_ref, acc_ref, *, relu):
    @pl.when(pl.program_id(2) == 0)
    def _init():
        acc_ref[...] = jnp.broadcast_to(b_ref[...], acc_ref.shape)

    acc_ref[...] += jnp.dot(x_ref[...], w_ref[...],
                            preferred_element_type=jnp.float32)

    @pl.when(pl.program_id(2) == pl.num_programs(2) - 1)
    def _finalize():
        y = acc_ref[...]
        if relu:
            y = jnp.maximum(y, 0.0)
        o_ref[...] = y


def linear(x2d, w, b, relu=False, tm=256, tn=256, tk=512):
    """o = x @ w + b (optionally ReLU).  x2d: [M, K], w: [K, N], b: [N].

    The output lane dim is padded up to a multiple of 128 (zero weight/bias
    columns) so stores are lane-dense, then sliced back (no-op when N already
    is a multiple of 128, e.g. real vocab / d_model sizes)."""
    M, K = x2d.shape
    _, N = w.shape
    n_pad = N if N % 128 == 0 else ((N + 127) // 128) * 128
    if n_pad != N:
        w = jnp.pad(w, ((0, 0), (0, n_pad - N)))
        b = jnp.pad(b, (0, n_pad - N))
    tm = _tile(M, tm)
    tn = _tile(n_pad, tn)
    tk = _tile(K, tk)
    out = pl.pallas_call(
        partial(_matmul_kernel, relu=relu),
        out_shape=jax.ShapeDtypeStruct((M, n_pad), jnp.float32),
        grid=(M // tm, n_pad // tn, K // tk),
        in_specs=[pl.BlockSpec((tm, tk), lambda i, j, k: (i, k)),
                  pl.BlockSpec((tk, tn), lambda i, j, k: (k, j)),
                  pl.BlockSpec((1, tn), lambda i, j, k: (0, j))],
        out_specs=pl.BlockSpec((tm, tn), lambda i, j, k: (i, j)),
        scratch_shapes=[pltpu.VMEM((tm, tn), jnp.float32)],
        compiler_params=pltpu.CompilerParams(
            dimension_semantics=("parallel", "parallel", "arbitrary")),
    )(x2d, w, b.reshape(1, n_pad))
    return out[:, :N] if n_pad != N else out


# ----------------------------- attention kernel ------------------------------
# Grid over batch; heads are static dk-slices of the lane-dense [S, 3D] block.

def _attention_kernel(qkv_ref, o_ref, *, num_heads, d_k, scale):
    D = num_heads * d_k
    qkv = qkv_ref[0]                                   # [S, 3D]
    outs = []
    for h in range(num_heads):                         # static unroll
        lo = h * d_k
        q = qkv[:, lo:lo + d_k]
        k = qkv[:, D + lo:D + lo + d_k]
        v = qkv[:, 2 * D + lo:2 * D + lo + d_k]
        s = lax.dot_general(q, k, (((1,), (1,)), ((), ())),
                            preferred_element_type=jnp.float32) * scale
        m = jnp.max(s, axis=-1, keepdims=True)
        p = jnp.exp(s - m)
        inv = pl.reciprocal(jnp.sum(p, axis=-1, keepdims=True), approx=True)
        outs.append(jnp.dot(p, v, preferred_element_type=jnp.float32) * inv)
    o_ref[0] = jnp.concatenate(outs, axis=-1)          # single dense store


def attention(qkv3d, num_heads, d_k):
    """qkv3d: [B, S, 3D] (fused Q|K|V projection) -> [B, S, D]."""
    B, S, threeD = qkv3d.shape
    D = num_heads * d_k
    return pl.pallas_call(
        partial(_attention_kernel, num_heads=num_heads, d_k=d_k,
                scale=1.0 / math.sqrt(d_k)),
        out_shape=jax.ShapeDtypeStruct((B, S, D), jnp.float32),
        grid=(B,),
        in_specs=[pl.BlockSpec((1, S, threeD), lambda b: (b, 0, 0))],
        out_specs=pl.BlockSpec((1, S, D), lambda b: (b, 0, 0)),
        compiler_params=pltpu.CompilerParams(
            dimension_semantics=("parallel",)),
    )(qkv3d)


# ------------------------------ fused FFN kernel ------------------------------
# fc2(relu(fc1(x))): the [tm, d_ff] intermediate never leaves VMEM.

def _ffn_kernel(x_ref, w1_ref, b1_ref, w2_ref, b2_ref, o_ref):
    h = jnp.dot(x_ref[...], w1_ref[...],
                preferred_element_type=jnp.float32) + b1_ref[...]
    h = jnp.maximum(h, 0.0)
    o_ref[...] = (jnp.dot(h, w2_ref[...],
                          preferred_element_type=jnp.float32) + b2_ref[...])


def ffn(x2d, w1, b1, w2, b2, tm=256):
    M, D = x2d.shape
    d_ff = w1.shape[1]
    tm = _tile(M, tm)
    return pl.pallas_call(
        _ffn_kernel,
        out_shape=jax.ShapeDtypeStruct((M, D), jnp.float32),
        grid=(M // tm,),
        in_specs=[pl.BlockSpec((tm, D), lambda i: (i, 0)),
                  pl.BlockSpec((D, d_ff), lambda i: (0, 0)),
                  pl.BlockSpec((1, d_ff), lambda i: (0, 0)),
                  pl.BlockSpec((d_ff, D), lambda i: (0, 0)),
                  pl.BlockSpec((1, D), lambda i: (0, 0))],
        out_specs=pl.BlockSpec((tm, D), lambda i: (i, 0)),
        compiler_params=pltpu.CompilerParams(
            dimension_semantics=("parallel",)),
    )(x2d, w1, b1.reshape(1, d_ff), w2, b2.reshape(1, D))


# ----------------------------- LayerNorm kernels ------------------------------

def _add_ln_kernel(x_ref, y_ref, g_ref, b_ref, o_ref):
    z = x_ref[...] + y_ref[...]
    mean = jnp.mean(z, axis=-1, keepdims=True)
    var = jnp.mean(jnp.square(z - mean), axis=-1, keepdims=True)
    o_ref[...] = (z - mean) * lax.rsqrt(var + 1e-5) * g_ref[...] + b_ref[...]


def _ln_kernel(x_ref, g_ref, b_ref, o_ref):
    z = x_ref[...]
    mean = jnp.mean(z, axis=-1, keepdims=True)
    var = jnp.mean(jnp.square(z - mean), axis=-1, keepdims=True)
    o_ref[...] = (z - mean) * lax.rsqrt(var + 1e-5) * g_ref[...] + b_ref[...]


def add_layernorm(x2d, y2d, gamma, beta, tm=512):
    """LayerNorm(x + y) over the last dim (PyTorch eps=1e-5, biased var)."""
    M, D = x2d.shape
    tm = _tile(M, tm)
    return pl.pallas_call(
        _add_ln_kernel,
        out_shape=jax.ShapeDtypeStruct((M, D), jnp.float32),
        grid=(M // tm,),
        in_specs=[pl.BlockSpec((tm, D), lambda i: (i, 0)),
                  pl.BlockSpec((tm, D), lambda i: (i, 0)),
                  pl.BlockSpec((1, D), lambda i: (0, 0)),
                  pl.BlockSpec((1, D), lambda i: (0, 0))],
        out_specs=pl.BlockSpec((tm, D), lambda i: (i, 0)),
        compiler_params=pltpu.CompilerParams(
            dimension_semantics=("parallel",)),
    )(x2d, y2d, gamma.reshape(1, D), beta.reshape(1, D))


def layernorm(x2d, gamma, beta, tm=512):
    """Plain LayerNorm(x) (no residual add, no zeros array)."""
    M, D = x2d.shape
    tm = _tile(M, tm)
    return pl.pallas_call(
        _ln_kernel,
        out_shape=jax.ShapeDtypeStruct((M, D), jnp.float32),
        grid=(M // tm,),
        in_specs=[pl.BlockSpec((tm, D), lambda i: (i, 0)),
                  pl.BlockSpec((1, D), lambda i: (0, 0)),
                  pl.BlockSpec((1, D), lambda i: (0, 0))],
        out_specs=pl.BlockSpec((tm, D), lambda i: (i, 0)),
        compiler_params=pltpu.CompilerParams(
            dimension_semantics=("parallel",)),
    )(x2d, gamma.reshape(1, D), beta.reshape(1, D))


# ----------------------------- parameter setup -----------------------------

def _dense_init(key, fan_in, fan_out):
    kw, kb = jax.random.split(key)
    lim = 1.0 / math.sqrt(fan_in)
    w = jax.random.uniform(kw, (fan_in, fan_out), jnp.float32, -lim, lim)
    b = jax.random.uniform(kb, (fan_out,), jnp.float32, -lim, lim)
    return w, b


def _positional_encoding(max_seq_length, d_model):
    position = jnp.arange(max_seq_length, dtype=jnp.float32)[:, None]
    div_term = jnp.exp(jnp.arange(0, d_model, 2, dtype=jnp.float32)
                       * (-math.log(10000.0) / d_model))
    pe = jnp.zeros((max_seq_length, d_model), jnp.float32)
    pe = pe.at[:, 0::2].set(jnp.sin(position * div_term))
    pe = pe.at[:, 1::2].set(jnp.cos(position * div_term))
    return pe


def init_params(key, vocab_size, d_model, num_heads, d_ff, num_layers,
                max_seq_length):
    keys = jax.random.split(key, 2 + num_layers)
    params = {
        "embedding": jax.random.normal(keys[0], (vocab_size, d_model),
                                       jnp.float32),
        "pe": _positional_encoding(max_seq_length, d_model),
        "g_final": jnp.ones((d_model,), jnp.float32),
        "b_final": jnp.zeros((d_model,), jnp.float32),
        "layers": [],
    }
    w_out, b_out = _dense_init(keys[1], d_model, vocab_size)
    params["w_out"], params["b_out"] = w_out, b_out

    for li in range(num_layers):
        lk = jax.random.split(keys[2 + li], 6)
        wq, bq = _dense_init(lk[0], d_model, d_model)
        wk, bk = _dense_init(lk[1], d_model, d_model)
        wv, bv = _dense_init(lk[2], d_model, d_model)
        wo, bo = _dense_init(lk[3], d_model, d_model)
        w1, bf1 = _dense_init(lk[4], d_model, d_ff)
        w2, bf2 = _dense_init(lk[5], d_ff, d_model)
        params["layers"].append(dict(
            # fused QKV projection: one [D, 3D] matmul per layer
            wqkv=jnp.concatenate([wq, wk, wv], axis=1),
            bqkv=jnp.concatenate([bq, bk, bv]),
            wo=wo, bo=bo,
            w1=w1, bf1=bf1, w2=w2, bf2=bf2,
            g1=jnp.ones((d_model,), jnp.float32),
            b1=jnp.zeros((d_model,), jnp.float32),
            g2=jnp.ones((d_model,), jnp.float32),
            b2=jnp.zeros((d_model,), jnp.float32),
        ))
    return params


# ------------------------------- forward pass ------------------------------

def transformer_forward(params, token_ids, num_heads):
    B, S = token_ids.shape
    vocab, D = params["embedding"].shape
    d_k = D // num_heads

    # Embedding lookup + positional encoding (plain-JAX glue).
    x = jnp.take(params["embedding"], token_ids, axis=0)         # [B, S, D]
    x = x + params["pe"][None, :S, :]
    # TODO(synk): nn.Dropout layers are identity here (eval-mode semantics).
    # TODO(synk): attention mask not implemented; this is the mask=None path.

    x2 = x.reshape(B * S, D)

    for lp in params["layers"]:
        # --- multi-head self-attention (fused QKV, heads packed in lanes) ---
        qkv = linear(x2, lp["wqkv"], lp["bqkv"])                  # [B*S, 3D]
        ao = attention(qkv.reshape(B, S, 3 * D), num_heads, d_k)  # [B, S, D]
        attn_out = linear(ao.reshape(B * S, D), lp["wo"], lp["bo"])
        x2 = add_layernorm(x2, attn_out, lp["g1"], lp["b1"])

        # --- position-wise feed-forward (fused fc1 + ReLU + fc2) ---
        ff = ffn(x2, lp["w1"], lp["bf1"], lp["w2"], lp["bf2"])
        x2 = add_layernorm(x2, ff, lp["g2"], lp["b2"])

    # final LayerNorm + output projection (lane-padded to 128 inside linear)
    x2 = layernorm(x2, params["g_final"], params["b_final"])
    logits = linear(x2, params["w_out"], params["b_out"])
    return logits.reshape(B, S, vocab)


# ----------------------------------- main -----------------------------------

if __name__ == "__main__":
    vocab_size = 50
    d_model = 32
    num_heads = 4
    d_ff = 64
    num_layers = 2
    max_seq_length = 16
    batch = 2
    seq = 8

    key = jax.random.PRNGKey(0)
    pkey, dkey = jax.random.split(key)
    params = init_params(pkey, vocab_size, d_model, num_heads, d_ff,
                         num_layers, max_seq_length)
    token_ids = jax.random.randint(dkey, (batch, seq), 0, vocab_size,
                                   dtype=jnp.int32)

    logits = transformer_forward(params, token_ids, num_heads)
    logits = jax.block_until_ready(logits)
    assert logits.shape == (batch, seq, vocab_size)
    assert logits.dtype == jnp.float32
    assert bool(jnp.all(jnp.isfinite(logits)))
    print("KERNEL_OK")
</pallas_src>

<mosaic_0001>
module attributes {stable_mosaic.version = 11 : i64} {
  func.func @_matmul_kernel(%arg0: i32, %arg1: i32, %arg2: i32, %arg3: memref<16x32xf32, #tpu.memory_space<vmem>>, %arg4: memref<32x128xf32, #tpu.memory_space<vmem>>, %arg5: memref<1x128xf32, #tpu.memory_space<vmem>>, %arg6: memref<16x128xf32, #tpu.memory_space<vmem>>, %arg7: memref<16x128xf32, #tpu.memory_space<vmem>>) attributes {dimension_semantics = [#tpu.dimension_semantics<parallel>, #tpu.dimension_semantics<parallel>, #tpu.dimension_semantics<arbitrary>], iteration_bounds = array<i64: 1, 1, 1>, scalar_prefetch = 0 : i64, scratch_operands = 1 : i64, tpu.core_type = #tpu.core_type<tc>, window_params = [{transform_indices = @transform_0, window_bounds = array<i64: 16, 32>}, {transform_indices = @transform_1, window_bounds = array<i64: 32, 128>}, {transform_indices = @transform_2, window_bounds = array<i64: 1, 128>}, {transform_indices = @transform_3, window_bounds = array<i64: 16, 128>}]} {
    %c0_i32 = arith.constant 0 : i32
    %0 = arith.cmpi eq, %arg2, %c0_i32 : i32
    %1 = arith.extui %0 : i1 to i32
    %c0_i32_0 = arith.constant 0 : i32
    %2 = arith.cmpi ne, %1, %c0_i32_0 : i32
    scf.if %2 {
      %c0_10 = arith.constant 0 : index
      %c0_11 = arith.constant 0 : index
      %12 = vector.load %arg5[%c0_10, %c0_11] : memref<1x128xf32, #tpu.memory_space<vmem>>, vector<1x128xf32>
      %13 = vector.shape_cast %12 : vector<1x128xf32> to vector<1x128xf32>
      %14 = vector.broadcast %13 : vector<1x128xf32> to vector<16x128xf32>
      %c0_12 = arith.constant 0 : index
      %c0_13 = arith.constant 0 : index
      %15 = vector.load %arg7[%c0_12, %c0_13] : memref<16x128xf32, #tpu.memory_space<vmem>>, vector<16x128xf32>
      tpu.vector_store %arg7[%c0_12, %c0_13], %14 {strides = array<i32>} : memref<16x128xf32, #tpu.memory_space<vmem>>, vector<16x128xf32>,
    } else {
    }
    %c0 = arith.constant 0 : index
    %c0_1 = arith.constant 0 : index
    %3 = vector.load %arg7[%c0, %c0_1] : memref<16x128xf32, #tpu.memory_space<vmem>>, vector<16x128xf32>
    %c0_2 = arith.constant 0 : index
    %c0_3 = arith.constant 0 : index
    %4 = vector.load %arg3[%c0_2, %c0_3] : memref<16x32xf32, #tpu.memory_space<vmem>>, vector<16x32xf32>
    %c0_4 = arith.constant 0 : index
    %c0_5 = arith.constant 0 : index
    %5 = vector.load %arg4[%c0_4, %c0_5] : memref<32x128xf32, #tpu.memory_space<vmem>>, vector<32x128xf32>
    %cst = arith.constant dense<0.000000e+00> : vector<16x128xf32>
    %6 = tpu.matmul %4, %5, %cst {dimension_numbers = #tpu.dot_dimension_numbers<[1], [0], [0], [1], [0, 0, 1, 1], [], []>} : vector<16x32xf32>, vector<32x128xf32>, vector<16x128xf32> -> vector<16x128xf32>
    %7 = arith.addf %3, %6 : vector<16x128xf32>
    %c0_6 = arith.constant 0 : index
    %c0_7 = arith.constant 0 : index
    %8 = vector.load %arg7[%c0_6, %c0_7] : memref<16x128xf32, #tpu.memory_space<vmem>>, vector<16x128xf32>
    tpu.vector_store %arg7[%c0_6, %c0_7], %7 {strides = array<i32>} : memref<16x128xf32, #tpu.memory_space<vmem>>, vector<16x128xf32>,
    %c0_i32_8 = arith.constant 0 : i32
    %9 = arith.cmpi eq, %arg2, %c0_i32_8 : i32
    %10 = arith.extui %9 : i1 to i32
    %c0_i32_9 = arith.constant 0 : i32
    %11 = arith.cmpi ne, %10, %c0_i32_9 : i32
    scf.if %11 {
      %c0_10 = arith.constant 0 : index
      %c0_11 = arith.constant 0 : index
      %12 = vector.load %arg7[%c0_10, %c0_11] : memref<16x128xf32, #tpu.memory_space<vmem>>, vector<16x128xf32>
      %c0_12 = arith.constant 0 : index
      %c0_13 = arith.constant 0 : index
      %13 = vector.load %arg6[%c0_12, %c0_13] : memref<16x128xf32, #tpu.memory_space<vmem>>, vector<16x128xf32>
      tpu.vector_store %arg6[%c0_12, %c0_13], %12 {strides = array<i32>} : memref<16x128xf32, #tpu.memory_space<vmem>>, vector<16x128xf32>,
    } else {
    }
    return
  }
  func.func @transform_0(%arg0: i32, %arg1: i32, %arg2: i32) -> (i32, i32) {
    %c0_i32 = arith.constant 0 : i32
    return %arg0, %arg2 : i32, i32
  }
  func.func @transform_1(%arg0: i32, %arg1: i32, %arg2: i32) -> (i32, i32) {
    %c0_i32 = arith.constant 0 : i32
    return %arg2, %arg1 : i32, i32
  }
  func.func @transform_2(%arg0: i32, %arg1: i32, %arg2: i32) -> (i32, i32) {
    %c0_i32 = arith.constant 0 : i32
    %c0_i32_0 = arith.constant 0 : i32
    return %c0_i32, %arg1 : i32, i32
  }
  func.func @transform_3(%arg0: i32, %arg1: i32, %arg2: i32) -> (i32, i32) {
    %c0_i32 = arith.constant 0 : i32
    return %arg0, %arg1 : i32, i32
  }
}

</mosaic_0001>

<llo_original>
// kernel: tpu_custom_call.1
$region0: #{tpu_custom_call.1}
  #allocation0 [shape = 'u32[]', space=smem, size = 0x4, offset = 0x4, fixed_abs, tag = 'smem constant byte address 0x4 - core index']
  #allocation1 [shape = 'u32[144,128]{1,0:T(1,128)}', space=vmem, size = 0x12000, scoped, tag = 'internal scratch']
  #allocation2 [shape = 'f32[16,128]{1,0:T(8,128)}', space=vmem, size = 0x2000, scoped, tag = 'scratch operand']
  %s0 = inlined_call_operand.hbm [shape: f32[16,32], index: 0, kind: input, shape index: {}]
  %s1 = inlined_call_operand.hbm [shape: f32[32,128], index: 1, kind: input, shape index: {}]
  %s2 = inlined_call_operand.vmem [shape: f32[1,128], index: 2, kind: input, shape index: {}]
  %s3 = inlined_call_operand.hbm [shape: f32[16,128], index: 3, kind: output, shape index: {}]
  %s4 = sld [smem:[#allocation0]]
  $region38: #{tpu_custom_call.1} parent=0
    _
  %s6 = ssub.s32 1, %s4
  %s7 = scalar_select 0, %s6, %s4
  $region1: #{tpu_custom_call.1} parent=0
    #allocation3 [shape = 'u8[8192]{0}', space=vmem, size = 0x2000, scoped, tag = 'input window, operand 0, single buffered']
    #allocation4 [shape = 's32[1]{0}', space=sflag, size = 0x4, scoped, tag = 'scoped memory for tpu_custom_call.1']
    #allocation5 [shape = 's32[1]{0}', space=sflag, size = 0x4, scoped, tag = 'scoped memory for tpu_custom_call.1']
    #allocation6 [shape = 'u8[16384]{0}', space=vmem, size = 0x4000, scoped, tag = 'input window, operand 1, single buffered']
    #allocation7 [shape = 's32[1]{0}', space=sflag, size = 0x4, scoped, tag = 'scoped memory for tpu_custom_call.1']
    #allocation8 [shape = 'u8[8192]{0}', space=vmem, size = 0x2000, scoped, tag = 'output window, operand 0, single buffered']
    %8 = vsyncpa [#allocation4], 0
    %9 = vsyncpa [#allocation7], 0
    %10 = vsyncpa [#allocation5], 0
    // Predicated region
    $region2: #{tpu_custom_call.1} parent=1 // pred_check
      _
    $region3: #{tpu_custom_call.1} parent=1 // pred_check_branch
      %12 = sbr.rel (0) target = $region5
    $region4: #{tpu_custom_call.1} parent=1 // pred_region
      %s14 = ssub.s32 256, 256
      %15 = vsyncadd [#allocation4], %s14
      %s16 = sshll.u32 [#allocation3], 4
      %s17 = int_to_ptr.vmem [resolvable:$true] %s16
      %22 = dma.hbm_to_vmem [thread:$0]  %s0, 256, %s17, [#allocation4], 128, 128, 8
    $region5: #{tpu_custom_call.1} parent=1 // pred_fallthru
      _
    // Predicated region
    $region6: #{tpu_custom_call.1} parent=1 // pred_check
      _
    $region7: #{tpu_custom_call.1} parent=1 // pred_check_branch
      %24 = sbr.rel (0) target = $region9
    $region8: #{tpu_custom_call.1} parent=1 // pred_region
      %s26 = ssub.s32 512, 512
      %27 = vsyncadd [#allocation7], %s26
      %s28 = sshll.u32 [#allocation6], 4
      %s29 = int_to_ptr.vmem [resolvable:$true] %s28
      %34 = dma.hbm_to_vmem [thread:$0]  %s1, 512, %s29, [#allocation7], 128, 128, 8
    $region9: #{tpu_custom_call.1} parent=1 // pred_fallthru
      _
    // Predicated region
    $region10: #{tpu_custom_call.1} parent=1 // pred_check
      _
    $region11: #{tpu_custom_call.1} parent=1 // pred_check_branch
      %36 = sbr.rel (0) target = $region13
    $region12: #{tpu_custom_call.1} parent=1 // pred_region
      _
    $region13: #{tpu_custom_call.1} parent=1 // pred_fallthru
      _
    // Predicated region
    $region14: #{tpu_custom_call.1} parent=1 // pred_check
      _
    $region15: #{tpu_custom_call.1} parent=1 // pred_check_branch
      %38 = sbr.rel (0) target = $region17
    $region16: #{tpu_custom_call.1} parent=1 // pred_region
      %39 = dma.done [#allocation4], 256
    $region17: #{tpu_custom_call.1} parent=1 // pred_fallthru
      _
    // Predicated region
    $region18: #{tpu_custom_call.1} parent=1 // pred_check
      _
    $region19: #{tpu_custom_call.1} parent=1 // pred_check_branch
      %41 = sbr.rel (0) target = $region21
    $region20: #{tpu_custom_call.1} parent=1 // pred_region
      %42 = dma.done [#allocation7], 512
    $region21: #{tpu_custom_call.1} parent=1 // pred_fallthru
      _
    %p43 = scmp.eq.s32.totalorder 0, 0
    // Predicated region
    $region22: #{tpu_custom_call.1} parent=1 // pred_check
      %p44 = pneg %p43
    $region23: #{tpu_custom_call.1} parent=1 // pred_check_branch
      %46 = sbr.rel (%p44) target = $region25
    $region24: #{tpu_custom_call.1} parent=1 // pred_region
      %v47 = vld [vmem:[%s2] sm:$0x1]
      %v49 = vlaneseq
      %v50 = vshrl.u32 %v49, 7
      %v51 = vsub.s32 0, %v50
      %v52 = vrot.slane %v47, %v51
      %54 = vst [vmem:[#allocation2] sm:$0xff] %v52
      %55 = vst [vmem:[#allocation2 + $0x8] sm:$0xff] %v52
    $region25: #{tpu_custom_call.1} parent=1 // pred_fallthru
      _
    %v56 = vld [vmem:[#allocation2] sm:$0xff]
    %v57 = vld [vmem:[#allocation2 + $0x8] sm:$0xff]
    %v58 = vld [vmem:[#allocation3] sm:$0xff]
    %v59 = vld [vmem:[#allocation3 + $0x8] sm:$0xff]
    %v60 = vld [vmem:[#allocation6] sm:$0xff]
    %v61 = vld [vmem:[#allocation6 + $0x8] sm:$0xff]
    %v62 = vld [vmem:[#allocation6 + $0x10] sm:$0xff]
    %v63 = vld [vmem:[#allocation6 + $0x18] sm:$0xff]
    %vm64 = vcmask 261120
    %v66 = vsel %vm64, %v58, 0
    %v69 = vsel %vm64, %v59, 0
    %71 = vmatprep.subr.mxu0 0.0
    %72 = vmatpush1.msra.mxu0 %v60
    %73 = vmatprep.subr.mxu0 0.0
    %74 = vmatpush1.msra.mxu0 %v61
    %75 = vmatprep.subr.mxu0 0.0
    %76 = vmatpush1.msra.mxu0 %v62
    %77 = vmatprep.subr.mxu0 0.0
    %78 = vmatpush1.msra.mxu0 %v63
    %79 = vmatprep.subr.mxu0 0.0
    %80 = vmatpush1.msra.mxu0 0.0
    %81 = vmatprep.subr.mxu0 0.0
    %82 = vmatpush1.msra.mxu0 0.0
    %83 = vmatprep.subr.mxu0 0.0
    %84 = vmatpush1.msra.mxu0 0.0
    %85 = vmatprep.subr.mxu0 0.0
    %86 = vmatpush1.msra.mxu0 0.0
    %87 = vmatprep.subr.mxu0 0.0
    %88 = vmatpush1.msra.mxu0 0.0
    %89 = vmatprep.subr.mxu0 0.0
    %90 = vmatpush1.msra.mxu0 0.0
    %91 = vmatprep.subr.mxu0 0.0
    %92 = vmatpush1.msra.mxu0 0.0
    %93 = vmatprep.subr.mxu0 0.0
    %94 = vmatpush1.msra.mxu0 0.0
    %95 = vmatprep.subr.mxu0 0.0
    %96 = vmatpush1.msra.mxu0 0.0
    %97 = vmatprep.subr.mxu0 0.0
    %98 = vmatpush1.msra.mxu0 0.0
    %99 = vmatprep.subr.mxu0 0.0
    %100 = vmatpush1.msra.mxu0 0.0
    %101 = vmatprep.subr.mxu0 0.0
    %102 = vmatpush1.msra.mxu0 0.0
    %103 = vmatprep.subr.mxu0 0.0
    %104 = vmatpush1.msra.mxu0 0.0
    %105 = vmatprep.subr.mxu0 0.0
    %106 = vmatpush1.msra.mxu0 0.0
    %107 = vmatprep.subr.mxu0 0.0
    %108 = vmatpush1.msra.mxu0 0.0
    %109 = vmatprep.subr.mxu0 0.0
    %110 = vmatpush1.msra.mxu0 0.0
    %111 = vmatprep.subr.mxu0 0.0
    %112 = vmatpush1.msra.mxu0 0.0
    %113 = vmatprep.subr.mxu0 0.0
    %114 = vmatpush1.msra.mxu0 0.0
    %115 = vmatprep.subr.mxu0 0.0
    %116 = vmatpush1.msra.mxu0 0.0
    %117 = vmatprep.subr.mxu0 0.0
    %118 = vmatpush1.msra.mxu0 0.0
    %119 = vmatprep.subr.mxu0 0.0
    %120 = vmatpush1.msra.mxu0 0.0
    %121 = vmatprep.subr.mxu0 0.0
    %122 = vmatpush1.msra.mxu0 0.0
    %123 = vmatprep.subr.mxu0 0.0
    %124 = vmatpush1.msra.mxu0 0.0
    %125 = vmatprep.subr.mxu0 0.0
    %126 = vmatpush1.msra.mxu0 0.0
    %127 = vmatprep.subr.mxu0 0.0
    %128 = vmatpush1.msra.mxu0 0.0
    %129 = vmatprep.subr.mxu0 0.0
    %130 = vmatpush1.msra.mxu0 0.0
    %131 = vmatprep.subr.mxu0 0.0
    %132 = vmatpush1.msra.mxu0 0.0
    %133 = vmatprep.subr.mxu0 0.0
    %134 = vmatpush1.msra.mxu0 0.0
    %135 = vmatprep.mubr.f32.mxu0 0.0
    %136 = vmatmul.mubr.f32.gmra.mrb[0].mxu0 %v66
    %v137 = vpop.f32.mrb[0].mxu0
    %v138 = vadd.f32 0.0, %v137
    %v139 = vpop.f32.mrb[0].mxu0
    %140 = vmatprep.mubr.f32.mxu0 0.0
    %141 = vmatmul.mubr.f32.gmra.mrb[0].mxu0 %v69
    %v142 = vpop.f32.mrb[0].mxu0
    %v143 = vadd.f32 0.0, %v142
    %v144 = vpop.f32.mrb[0].mxu0
    %145 = vdwg.mxu0
    %v146 = vadd.f32 %v56, %v138
    %v147 = vadd.f32 %v57, %v143
    %148 = vst [vmem:[#allocation2] sm:$0xff] %v146
    %149 = vst [vmem:[#allocation2 + $0x8] sm:$0xff] %v147
    // Predicated region
    $region26: #{tpu_custom_call.1} parent=1 // pred_check
      %p150 = pneg %p43
    $region27: #{tpu_custom_call.1} parent=1 // pred_check_branch
      %152 = sbr.rel (%p150) target = $region29
    $region28: #{tpu_custom_call.1} parent=1 // pred_region
      %v153 = vld [vmem:[#allocation2] sm:$0xff]
      %v154 = vld [vmem:[#allocation2 + $0x8] sm:$0xff]
      %155 = vst [vmem:[#allocation8] sm:$0xff] %v153
      %156 = vst [vmem:[#allocation8 + $0x8] sm:$0xff] %v154
    $region29: #{tpu_custom_call.1} parent=1 // pred_fallthru
      _
    // Predicated region
    $region30: #{tpu_custom_call.1} parent=1 // pred_check
      _
    $region31: #{tpu_custom_call.1} parent=1 // pred_check_branch
      %158 = sbr.rel (0) target = $region33
    $region32: #{tpu_custom_call.1} parent=1 // pred_region
      %s160 = ssub.s32 256, 256
      %161 = vsyncadd [#allocation5], %s160
      %s162 = sshll.u32 [#allocation8], 4
      %s163 = int_to_ptr.vmem [resolvable:$true] %s162
      %168 = dma.vmem_to_hbm [thread:$0]  %s163, 256, %s3, [#allocation5], 128, 128, 8
    $region33: #{tpu_custom_call.1} parent=1 // pred_fallthru
      _
    // Predicated region
    $region34: #{tpu_custom_call.1} parent=1 // pred_check
      _
    $region35: #{tpu_custom_call.1} parent=1 // pred_check_branch
      %170 = sbr.rel (0) target = $region37
    $region36: #{tpu_custom_call.1} parent=1 // pred_region
      %171 = dma.done [#allocation5], 256
    $region37: #{tpu_custom_call.1} parent=1 // pred_fallthru
      _
    %172 = vsyncpa [#allocation4], 1
    %173 = vsyncpa [#allocation7], 1
    %174 = vsyncpa [#allocation5], 1

</llo_original>
